<compile_context>
chip_gen: v6e
topology: v6e:2x2x1
jax: 0.10.0
libtpu: 0.0.40
codegen_flags: <defaults>
</compile_context>

<pallas_src>
import jax
import jax.numpy as jnp
from jax.experimental import pallas as pl
from jax.experimental.pallas import tpu as pltpu


def _round_up(x, m):
    return ((x + m - 1) // m) * m


def _diff_nn_kernel(scale_ref, x_ref, y_ref, y2s_ref, soft_ref, idx_ref):
    # scale_ref: SMEM (1,) f32   = 2 / clamp(temp^2, temp_min)
    # x_ref:     VMEM (TN, D) f32 feats0 row tile
    # y_ref:     VMEM (M, D)  f32 feats1 (grid-resident)
    # y2s_ref:   VMEM (1, M)  f32 ||y_j||^2 / clamp(temp^2, temp_min)
    x = x_ref[...]
    y = y_ref[...]
    scale = scale_ref[0]

    # logits_ij = (2 * x_i.y_j - ||y_j||^2) / temp
    # The per-row -||x_i||^2/temp constant is dropped: softmax and argmax over
    # axis=-1 are exactly invariant to it.
    xy = jax.lax.dot_general(
        x, y,
        dimension_numbers=(((1,), (1,)), ((), ())),   # contract last dims (MXU)
        preferred_element_type=jnp.float32)           # (TN, M)
    logits = xy * scale - y2s_ref[...]

    # Row-stable softmax. Exact divide for the denominator: the approximate
    # EUP reciprocal is not precise enough for row sums == 1 within 1e-3.
    m = jnp.max(logits, axis=-1, keepdims=True)
    e = jnp.exp(logits - m)
    s = jnp.sum(e, axis=-1, keepdims=True)
    soft_ref[...] = e / s

    # First-max argmax straight from the logits (softmax is monotone; reuse m).
    ncols = logits.shape[-1]
    col = jax.lax.broadcasted_iota(jnp.int32, logits.shape, 1)
    idx = jnp.min(jnp.where(logits == m, col, jnp.int32(ncols)),
                  axis=-1, keepdims=True)             # (TN, 1) i32
    idx_ref[...] = idx


def diff_nn_search(feats0, feats1, temp_param, temp_min=1e-4, training=True,
                   tile_n=256):
    """JAX/Pallas equivalent of DiffNNSearchKeops.forward.

    feats0: (N, D) f32, feats1: (M, D) f32, temp_param: scalar f32.
    Returns (asgn_diff (N, M) f32, indices (N,) i32).
    """
    feats0 = jnp.asarray(feats0, jnp.float32)
    feats1 = jnp.asarray(feats1, jnp.float32)
    N, D = feats0.shape
    M, _ = feats1.shape

    # get_temp(): clamp(temp ** 2, min=temp_min); fold into a single scale.
    inv_temp = 1.0 / jnp.maximum(jnp.asarray(temp_param, jnp.float32) ** 2,
                                 jnp.float32(temp_min))
    scale = jnp.reshape(2.0 * inv_temp, (1,))                       # SMEM scalar
    y2s = (jnp.sum(feats1 * feats1, axis=-1) * inv_temp)[None, :]   # (1, M)

    # Tile the N axis; pad rows to a multiple of the tile (multiple of 8).
    # TODO(synk): for very large M, add an M-axis grid with online softmax to
    # cap VMEM at TILE_N x TILE_M (needed once M*4*TILE_N exceeds ~16 MiB).
    tn = min(int(tile_n), _round_up(N, 8))
    n_pad = _round_up(N, tn)
    if n_pad != N:
        feats0 = jnp.pad(feats0, ((0, n_pad - N), (0, 0)))

    soft, idx = pl.pallas_call(
        _diff_nn_kernel,
        grid=(n_pad // tn,),
        out_shape=(
            jax.ShapeDtypeStruct((n_pad, M), jnp.float32),
            jax.ShapeDtypeStruct((n_pad, 1), jnp.int32),
        ),
        in_specs=[
            pl.BlockSpec(memory_space=pltpu.MemorySpace.SMEM),  # scale scalar
            pl.BlockSpec((tn, D), lambda i: (i, 0)),            # feats0 row tile
            pl.BlockSpec((M, D), lambda i: (0, 0)),             # feats1, resident
            pl.BlockSpec((1, M), lambda i: (0, 0)),             # ||y||^2 / temp
        ],
        out_specs=(
            pl.BlockSpec((tn, M), lambda i: (i, 0)),            # softmax tile
            pl.BlockSpec((tn, 1), lambda i: (i, 0)),            # argmax indices
        ),
        compiler_params=pltpu.CompilerParams(
            dimension_semantics=("parallel",),                  # megacore on v7x
            vmem_limit_bytes=48 * 1024 * 1024,
        ),
    )(scale, feats0, feats1, y2s)

    soft = soft[:N]
    indices = jnp.squeeze(idx[:N], axis=-1)               # (N,)

    if training:
        asgn_diff = soft
    else:
        # eval: straight-through hard one-hot (scatter_ in the reference).
        asgn = jax.nn.one_hot(indices, M, dtype=soft.dtype)
        asgn_diff = asgn - jax.lax.stop_gradient(soft) + soft

    return asgn_diff, indices


if __name__ == "__main__":
    key = jax.random.PRNGKey(0)
    k0, k1 = jax.random.split(key)

    N, M, D = 8, 16, 32
    feats0 = jax.random.normal(k0, (N, D), dtype=jnp.float32)
    feats1 = jax.random.normal(k1, (M, D), dtype=jnp.float32)

    # Matches nn.Parameter(torch.tensor(1.0)).
    temp_param = jnp.float32(1.0)

    asgn_diff, indices = diff_nn_search(feats0, feats1, temp_param,
                                        temp_min=1e-4, training=True)
    jax.block_until_ready((asgn_diff, indices))

    # Reference check in plain JAX (same math as the PyTorch module).
    temp = jnp.maximum(temp_param ** 2, 1e-4)
    d2 = (jnp.sum(feats0**2, -1, keepdims=True)
          + jnp.sum(feats1**2, -1)[None, :]
          - 2.0 * feats0 @ feats1.T)
    ref_soft = jax.nn.softmax(-d2 / temp, axis=-1)
    ref_idx = jnp.argmax(ref_soft, axis=-1)

    assert asgn_diff.shape == (N, M)
    assert indices.shape == (N,)
    assert jnp.allclose(jnp.sum(asgn_diff, axis=-1), 1.0, atol=1e-3)
    assert jnp.allclose(asgn_diff, ref_soft, atol=1e-3)
    assert bool(jnp.all(indices == ref_idx))
    assert bool(jnp.all((indices >= 0) & (indices < M)))

    print("KERNEL_OK")
</pallas_src>

<mosaic_0001>
module attributes {stable_mosaic.version = 11 : i64} {
  func.func @_diff_nn_kernel(%arg0: i32, %arg1: memref<1xf32, #tpu.memory_space<smem>>, %arg2: memref<8x32xf32, #tpu.memory_space<vmem>>, %arg3: memref<16x32xf32, #tpu.memory_space<vmem>>, %arg4: memref<1x16xf32, #tpu.memory_space<vmem>>, %arg5: memref<8x16xf32, #tpu.memory_space<vmem>>, %arg6: memref<8x1xi32, #tpu.memory_space<vmem>>) attributes {dimension_semantics = [#tpu.dimension_semantics<parallel>], iteration_bounds = array<i64: 1>, scalar_prefetch = 0 : i64, scratch_operands = 0 : i64, tpu.core_type = #tpu.core_type<tc>, window_params = [{transform_indices = @transform_0, window_bounds = array<i64: 1>}, {transform_indices = @transform_1, window_bounds = array<i64: 8, 32>}, {pipeline_mode = #tpu.pipeline_mode<synchronous>, transform_indices = @transform_2, window_bounds = array<i64: 16, 32>}, {pipeline_mode = #tpu.pipeline_mode<synchronous>, transform_indices = @transform_3, window_bounds = array<i64: 1, 16>}, {transform_indices = @transform_4, window_bounds = array<i64: 8, 16>}, {transform_indices = @transform_5, window_bounds = array<i64: 8, 1>}]} {
    %c0 = arith.constant 0 : index
    %c0_0 = arith.constant 0 : index
    %0 = vector.load %arg2[%c0, %c0_0] : memref<8x32xf32, #tpu.memory_space<vmem>>, vector<8x32xf32>
    %c0_1 = arith.constant 0 : index
    %c0_2 = arith.constant 0 : index
    %1 = vector.load %arg3[%c0_1, %c0_2] : memref<16x32xf32, #tpu.memory_space<vmem>>, vector<16x32xf32>
    %c0_3 = arith.constant 0 : index
    %2 = memref.load %arg1[%c0_3] : memref<1xf32, #tpu.memory_space<smem>>
    %cst = arith.constant dense<0.000000e+00> : vector<8x16xf32>
    %3 = tpu.matmul %0, %1, %cst {dimension_numbers = #tpu.dot_dimension_numbers<[1], [1], [0], [0], [0, 0, 1, 0], [], []>} : vector<8x32xf32>, vector<16x32xf32>, vector<8x16xf32> -> vector<8x16xf32>
    %4 = vector.broadcast %2 : f32 to vector<8x16xf32>
    %5 = arith.mulf %3, %4 : vector<8x16xf32>
    %c0_4 = arith.constant 0 : index
    %c0_5 = arith.constant 0 : index
    %6 = vector.load %arg4[%c0_4, %c0_5] : memref<1x16xf32, #tpu.memory_space<vmem>>, vector<1x16xf32>
    %7 = vector.broadcast %6 : vector<1x16xf32> to vector<8x16xf32>
    %8 = arith.subf %5, %7 : vector<8x16xf32>
    %cst_6 = arith.constant dense<0xFF800000> : vector<8xf32>
    %9 = vector.multi_reduction <maximumf>, %8, %cst_6 [1] : vector<8x16xf32> to vector<8xf32>
    %10 = vector.shape_cast %9 : vector<8xf32> to vector<8x1xf32>
    %11 = vector.broadcast %10 : vector<8x1xf32> to vector<8x16xf32>
    %12 = arith.subf %8, %11 : vector<8x16xf32>
    %13 = math.exp %12 : vector<8x16xf32>
    %cst_7 = arith.constant dense<0.000000e+00> : vector<8xf32>
    %14 = vector.multi_reduction <add>, %13, %cst_7 [1] : vector<8x16xf32> to vector<8xf32>
    %15 = vector.shape_cast %14 : vector<8xf32> to vector<8x1xf32>
    %16 = vector.broadcast %15 : vector<8x1xf32> to vector<8x16xf32>
    %17 = arith.divf %13, %16 : vector<8x16xf32>
    %c0_8 = arith.constant 0 : index
    %c0_9 = arith.constant 0 : index
    %18 = vector.load %arg5[%c0_8, %c0_9] : memref<8x16xf32, #tpu.memory_space<vmem>>, vector<8x16xf32>
    tpu.vector_store %arg5[%c0_8, %c0_9], %17 {strides = array<i32>} : memref<8x16xf32, #tpu.memory_space<vmem>>, vector<8x16xf32>,
    %19 = tpu.iota {dimensions = array<i32: 1>} : vector<8x16xi32>
    %20 = vector.broadcast %10 : vector<8x1xf32> to vector<8x16xf32>
    %21 = arith.cmpf oeq, %8, %20 : vector<8x16xf32>
    %c16_i32 = arith.constant 16 : i32
    %22 = vector.broadcast %c16_i32 : i32 to vector<8x16xi32>
    %23 = arith.select %21, %19, %22 : vector<8x16xi1>, vector<8x16xi32>
    %cst_10 = arith.constant dense<2147483647> : vector<8xi32>
    %24 = vector.multi_reduction <minsi>, %23, %cst_10 [1] : vector<8x16xi32> to vector<8xi32>
    %25 = vector.shape_cast %24 : vector<8xi32> to vector<8x1xi32>
    %c0_11 = arith.constant 0 : index
    %c0_12 = arith.constant 0 : index
    %26 = vector.load %arg6[%c0_11, %c0_12] : memref<8x1xi32, #tpu.memory_space<vmem>>, vector<8x1xi32>
    tpu.vector_store %arg6[%c0_11, %c0_12], %25 {strides = array<i32>} : memref<8x1xi32, #tpu.memory_space<vmem>>, vector<8x1xi32>,
    return
  }
  func.func @transform_0(%arg0: i32) -> i32 {
    %c0_i32 = arith.constant 0 : i32
    %c0_i32_0 = arith.constant 0 : i32
    return %c0_i32 : i32
  }
  func.func @transform_1(%arg0: i32) -> (i32, i32) {
    %c0_i32 = arith.constant 0 : i32
    %c0_i32_0 = arith.constant 0 : i32
    return %arg0, %c0_i32 : i32, i32
  }
  func.func @transform_2(%arg0: i32) -> (i32, i32) {
    %c0_i32 = arith.constant 0 : i32
    %c0_i32_0 = arith.constant 0 : i32
    %c0_i32_1 = arith.constant 0 : i32
    return %c0_i32, %c0_i32_0 : i32, i32
  }
  func.func @transform_3(%arg0: i32) -> (i32, i32) {
    %c0_i32 = arith.constant 0 : i32
    %c0_i32_0 = arith.constant 0 : i32
    %c0_i32_1 = arith.constant 0 : i32
    return %c0_i32, %c0_i32_0 : i32, i32
  }
  func.func @transform_4(%arg0: i32) -> (i32, i32) {
    %c0_i32 = arith.constant 0 : i32
    %c0_i32_0 = arith.constant 0 : i32
    return %arg0, %c0_i32 : i32, i32
  }
  func.func @transform_5(%arg0: i32) -> (i32, i32) {
    %c0_i32 = arith.constant 0 : i32
    %c0_i32_0 = arith.constant 0 : i32
    return %arg0, %c0_i32 : i32, i32
  }
}

</mosaic_0001>

<llo_original>
// kernel: tpu_custom_call.1
$region0: #{tpu_custom_call.1}
  #allocation0 [shape = 'u32[]', space=smem, size = 0x4, offset = 0x4, fixed_abs, tag = 'smem constant byte address 0x4 - core index']
  #allocation1 [shape = 'u32[144,128]{1,0:T(1,128)}', space=vmem, size = 0x12000, scoped, tag = 'internal scratch']
  #allocation2 [shape = 'f32[1]{0:T(128)S(6)}', space=smem, size = 0x200, scoped, tag = 'scoped memory for tpu_custom_call.1']
  %s0 = inlined_call_operand.<no memory space> [shape: f32[1], index: 0, kind: input, shape index: {}]
  %s1 = inlined_call_operand.hbm [shape: f32[8,32], index: 1, kind: input, shape index: {}]
  %s2 = inlined_call_operand.hbm [shape: f32[16,32], index: 2, kind: input, shape index: {}]
  %s3 = inlined_call_operand.vmem [shape: f32[1,16], index: 3, kind: input, shape index: {}]
  %s4 = inlined_call_operand.hbm [shape: f32[8,16], index: 4, kind: output, shape index: {0}]
  %s5 = inlined_call_operand.vmem [shape: s32[8,1], index: 5, kind: output, shape index: {1}]
  %6 = xla_tuple %s4, %s5
  %s7 = sld [smem:[#allocation0]]
  $region42: #{tpu_custom_call.1} parent=0
    _
  %s9 = ssub.s32 1, %s7
  %s10 = scalar_select 0, %s9, %s7
  %11 = sst [smem:[#allocation2]] %s0
  $region1: #{tpu_custom_call.1} parent=0
    #allocation3 [shape = 'u8[4096]{0}', space=vmem, size = 0x1000, scoped, tag = 'input window, operand 1, single buffered']
    #allocation4 [shape = 's32[1]{0}', space=sflag, size = 0x4, scoped, tag = 'scoped memory for tpu_custom_call.1']
    #allocation5 [shape = 's32[1]{0}', space=sflag, size = 0x4, scoped, tag = 'scoped memory for tpu_custom_call.1']
    #allocation6 [shape = 'u8[8192]{0}', space=vmem, size = 0x2000, scoped, tag = 'input window, operand 2, single buffered']
    #allocation7 [shape = 's32[1]{0}', space=sflag, size = 0x4, scoped, tag = 'scoped memory for tpu_custom_call.1']
    #allocation8 [shape = 'u8[4096]{0}', space=vmem, size = 0x1000, scoped, tag = 'output window, operand 0, single buffered']
    %12 = vsyncpa [#allocation4], 0
    %13 = vsyncpa [#allocation7], 0
    %14 = vsyncpa [#allocation5], 0
    // Predicated region
    $region2: #{tpu_custom_call.1} parent=1 // pred_check
      _
    $region3: #{tpu_custom_call.1} parent=1 // pred_check_branch
      %16 = sbr.rel (0) target = $region5
    $region4: #{tpu_custom_call.1} parent=1 // pred_region
      _
    $region5: #{tpu_custom_call.1} parent=1 // pred_fallthru
      _
    // Predicated region
    $region6: #{tpu_custom_call.1} parent=1 // pred_check
      _
    $region7: #{tpu_custom_call.1} parent=1 // pred_check_branch
      %18 = sbr.rel (0) target = $region9
    $region8: #{tpu_custom_call.1} parent=1 // pred_region
      %s20 = ssub.s32 128, 128
      %21 = vsyncadd [#allocation4], %s20
      %s23 = sshll.u32 [#allocation3], 4
      %s24 = int_to_ptr.vmem [resolvable:$true] %s23
      %26 = dma.hbm_to_vmem [thread:$0]  %s1, 128, %s24, [#allocation4]
    $region9: #{tpu_custom_call.1} parent=1 // pred_fallthru
      _
    // Predicated region
    $region10: #{tpu_custom_call.1} parent=1 // pred_check
      _
    $region11: #{tpu_custom_call.1} parent=1 // pred_check_branch
      %28 = sbr.rel (0) target = $region13
    $region12: #{tpu_custom_call.1} parent=1 // pred_region
      %s30 = ssub.s32 256, 256
      %31 = vsyncadd [#allocation7], %s30
      %s32 = sshll.u32 [#allocation6], 4
      %s33 = int_to_ptr.vmem [resolvable:$true] %s32
      %38 = dma.hbm_to_vmem [thread:$0]  %s2, 256, %s33, [#allocation7], 128, 128, 8
    $region13: #{tpu_custom_call.1} parent=1 // pred_fallthru
      _
    // Predicated region
    $region14: #{tpu_custom_call.1} parent=1 // pred_check
      _
    $region15: #{tpu_custom_call.1} parent=1 // pred_check_branch
      %40 = sbr.rel (0) target = $region17
    $region16: #{tpu_custom_call.1} parent=1 // pred_region
      _
    $region17: #{tpu_custom_call.1} parent=1 // pred_fallthru
      _
    // Predicated region
    $region18: #{tpu_custom_call.1} parent=1 // pred_check
      _
    $region19: #{tpu_custom_call.1} parent=1 // pred_check_branch
      %42 = sbr.rel (0) target = $region21
    $region20: #{tpu_custom_call.1} parent=1 // pred_region
      %43 = dma.done [#allocation4], 128
    $region21: #{tpu_custom_call.1} parent=1 // pred_fallthru
      _
    // Predicated region
    $region22: #{tpu_custom_call.1} parent=1 // pred_check
      _
    $region23: #{tpu_custom_call.1} parent=1 // pred_check_branch
      %45 = sbr.rel (0) target = $region25
    $region24: #{tpu_custom_call.1} parent=1 // pred_region
      %46 = dma.done [#allocation7], 256
    $region25: #{tpu_custom_call.1} parent=1 // pred_fallthru
      _
    %v47 = vld [vmem:[#allocation3] sm:$0xff]
    %v48 = vld [vmem:[#allocation6] sm:$0xff]
    %v49 = vld [vmem:[#allocation6 + $0x8] sm:$0xff]
    %s50 = sld [smem:[#allocation2]]
    %vm51 = vcmask 261120
    %v53 = vsel %vm51, %v47, 0
    %v56 = vsel %vm51, %v48, 0
    %v59 = vsel %vm51, %v49, 0
    %61 = vmatprep.subr.mxu0 0.0
    %62 = vmatpush1.xpose.msra.mxu0 0.0
    %63 = vmatprep.subr.mxu0 0.0
    %64 = vmatpush1.xpose.msra.mxu0 0.0
    %65 = vmatprep.subr.mxu0 0.0
    %66 = vmatpush1.xpose.msra.mxu0 0.0
    %67 = vmatprep.subr.mxu0 0.0
    %68 = vmatpush1.xpose.msra.mxu0 0.0
    %69 = vmatprep.subr.mxu0 0.0
    %70 = vmatpush1.xpose.msra.mxu0 0.0
    %71 = vmatprep.subr.mxu0 0.0
    %72 = vmatpush1.xpose.msra.mxu0 0.0
    %73 = vmatprep.subr.mxu0 0.0
    %74 = vmatpush1.xpose.msra.mxu0 0.0
    %75 = vmatprep.subr.mxu0 0.0
    %76 = vmatpush1.xpose.msra.mxu0 0.0
    %77 = vmatprep.subr.mxu0 0.0
    %78 = vmatpush1.xpose.msra.mxu0 0.0
    %79 = vmatprep.subr.mxu0 0.0
    %80 = vmatpush1.xpose.msra.mxu0 0.0
    %81 = vmatprep.subr.mxu0 0.0
    %82 = vmatpush1.xpose.msra.mxu0 0.0
    %83 = vmatprep.subr.mxu0 0.0
    %84 = vmatpush1.xpose.msra.mxu0 0.0
    %85 = vmatprep.subr.mxu0 0.0
    %86 = vmatpush1.xpose.msra.mxu0 0.0
    %87 = vmatprep.subr.mxu0 0.0
    %88 = vmatpush1.xpose.msra.mxu0 0.0
    %89 = vmatprep.subr.mxu0 0.0
    %90 = vmatpush1.xpose.msra.mxu0 %v59
    %91 = vmatprep.subr.mxu0 0.0
    %92 = vmatpush1.xpose.msra.mxu0 %v56
    %93 = vmatprep.subr.mxu0 0.0
    %94 = vmatpush2.xpose.msra.mxu0 0.0
    %95 = vmatprep.subr.mxu0 0.0
    %96 = vmatpush2.xpose.msra.mxu0 0.0
    %97 = vmatprep.subr.mxu0 0.0
    %98 = vmatpush2.xpose.msra.mxu0 0.0
    %99 = vmatprep.subr.mxu0 0.0
    %100 = vmatpush2.xpose.msra.mxu0 0.0
    %101 = vmatprep.subr.mxu0 0.0
    %102 = vmatpush2.xpose.msra.mxu0 0.0
    %103 = vmatprep.subr.mxu0 0.0
    %104 = vmatpush2.xpose.msra.mxu0 0.0
    %105 = vmatprep.subr.mxu0 0.0
    %106 = vmatpush2.xpose.msra.mxu0 0.0
    %107 = vmatprep.subr.mxu0 0.0
    %108 = vmatpush2.xpose.msra.mxu0 0.0
    %109 = vmatprep.subr.mxu0 0.0
    %110 = vmatpush2.xpose.msra.mxu0 0.0
    %111 = vmatprep.subr.mxu0 0.0
    %112 = vmatpush2.xpose.msra.mxu0 0.0
    %113 = vmatprep.subr.mxu0 0.0
    %114 = vmatpush2.xpose.msra.mxu0 0.0
    %115 = vmatprep.subr.mxu0 0.0
    %116 = vmatpush2.xpose.msra.mxu0 0.0
    %117 = vmatprep.subr.mxu0 0.0
    %118 = vmatpush2.xpose.msra.mxu0 0.0
    %119 = vmatprep.subr.mxu0 0.0
    %120 = vmatpush2.xpose.msra.mxu0 0.0
    %121 = vmatprep.subr.mxu0 0.0
    %122 = vmatpush2.xpose.msra.mxu0 0.0
    %123 = vmatprep.subr.mxu0 0.0
    %124 = vmatpush2.xpose.msra.mxu0 0.0
    %125 = vmatprep.mubr.f32.mxu0 0.0
    %126 = vmatmul.mubr.f32.gmra.mxu0 %v53
    %v127 = vpop.f32.mrf.mxu0
    %v128 = vadd.f32 0.0, %v127
    %v129 = vpop.f32.mrf.mxu0
    %130 = vdwg.mxu0
    %v131 = vstv %s50
    %v132 = vmul.f32 %v128, %v131
    %v133 = vld [vmem:[%s3] sm:$0x1]
    %v135 = vlaneseq
    %v136 = vshrl.u32 %v135, 7
    %v137 = vsub.s32 0, %v136
    %v138 = vrot.slane %v133, %v137
    %v140 = vsub.f32 %v132, %v138
    %vm141 = vcmask 130048
    %v142 = vsel %vm141, %v140, -inf
    %143 = vmax.xlane.f32.xlu0 %v142
    %v144 = vpop.xlane.xlu0 %143
    %v145 = vsub.f32 %v140, %v144
    %v146 = vmul.f32 %v145, 1.442695
    %v147 = vpow.pop %v146
    %v148 = vsel %vm141, %v147, 0.0
    %149 = vadd.xlane.f32.xlu0 %v148
    %v150 = vpop.xlane.xlu0 %149
    %v151 = vrcp.pop %v150
    %v152 = vmul.f32 %v147, %v151
    %153 = vst.msk [vmem:[#allocation8] sm:$0xff] %vm141, %v152
    %v154 = vlaneseq
    %v155 = vand.u32 %v154, 127
    %vm156 = vcmp.eq.f32.partialorder %v140, %v144
    %v157 = vsel %vm156, %v155, 16
    %v158 = vsel %vm141, %v157, 2147483647
    %v159 = vand.u32 %v158, 65535
    %v160 = vshra.s32 %v158, 16
    %v161 = vcvt.s32.f32 %v159
    %v162 = vcvt.s32.f32 %v160
    %163 = vmin.xlane.f32.xlu0 %v162
    %v164 = vpop.xlane.xlu0 %163
    %vm165 = vcmp.eq.f32.partialorder %v162, %v164
    %v166 = vsel %vm165, %v161, inf
    %167 = vmin.xlane.f32.xlu0 %v166
    %v168 = vpop.xlane.xlu0 %167
    %v169 = vcvt.f32.s32 %v168
    %v170 = vcvt.f32.s32 %v164
    %v171 = vshll.u32 %v170, 16
    %v172 = vadd.s32 %v171, %v169
    %vm173 = vcmask 7168
    %174 = vst.msk [vmem:[%s5] sm:$0xff] %vm173, %v172
    // Predicated region
    $region26: #{tpu_custom_call.1} parent=1 // pred_check
      _
    $region27: #{tpu_custom_call.1} parent=1 // pred_check_branch
      %176 = sbr.rel (0) target = $region29
    $region28: #{tpu_custom_call.1} parent=1 // pred_region
      %s178 = ssub.s32 128, 128
      %179 = vsyncadd [#allocation5], %s178
      %s181 = sshll.u32 [#allocation8], 4
      %s182 = int_to_ptr.vmem [resolvable:$true] %s181
      %184 = dma.vmem_to_hbm [thread:$0]  %s182, 128, %s4, [#allocation5]
    $region29: #{tpu_custom_call.1} parent=1 // pred_fallthru
      _
    // Predicated region
    $region30: #{tpu_custom_call.1} parent=1 // pred_check
      _
    $region31: #{tpu_custom_call.1} parent=1 // pred_check_branch
      %186 = sbr.rel (0) target = $region33
    $region32: #{tpu_custom_call.1} parent=1 // pred_region
      _
    $region33: #{tpu_custom_call.1} parent=1 // pred_fallthru
      _
    // Predicated region
    $region34: #{tpu_custom_call.1} parent=1 // pred_check
      _
    $region35: #{tpu_custom_call.1} parent=1 // pred_check_branch
      %188 = sbr.rel (0) target = $region37
    $region36: #{tpu_custom_call.1} parent=1 // pred_region
      %189 = dma.done [#allocation5], 128
    $region37: #{tpu_custom_call.1} parent=1 // pred_fallthru
      _
    // Predicated region
    $region38: #{tpu_custom_call.1} parent=1 // pred_check
      _
    $region39: #{tpu_custom_call.1} parent=1 // pred_check_branch
      %191 = sbr.rel (0) target = $region41
    $region40: #{tpu_custom_call.1} parent=1 // pred_region
      _
    $region41: #{tpu_custom_call.1} parent=1 // pred_fallthru
      _
    %192 = vsyncpa [#allocation4], 1
    %193 = vsyncpa [#allocation7], 1
    %194 = vsyncpa [#allocation5], 1

</llo_original>
